<compile_context>
chip_gen: v7x
topology: tpu7x:2x2x1
jax: 0.10.0
libtpu: 0.0.40
codegen_flags: <defaults>
</compile_context>

<pallas_src>
import jax
import jax.numpy as jnp
from jax.experimental import pallas as pl
from jax.experimental.pallas import tpu as pltpu


def _round_up(x, m):
    return ((x + m - 1) // m) * m


def _vmem_capacity_bytes():
    """Physical VMEM per TensorCore (128 MiB v5e/v6e, 64 MiB v7x); conservative fallback."""
    try:
        info = pltpu.get_tpu_info()
        cap = int(getattr(info, "vmem_capacity_bytes", 0) or 0)
        if cap > 0:
            return cap
    except Exception:
        pass
    return 64 * 1024 * 1024


def _make_encoder_kernel(z_dim):
    def kernel(x_ref, w_ref, b_ref, out_ref):
        # x: (TB, D) native dtype ; w: (D, C) compute dtype ; b: (1, C) f32 ; out: (TB, C) f32
        # In-kernel narrow cast -> no extra HBM pass over x in the wrapper.
        x = x_ref[...].astype(w_ref.dtype)
        acc = jnp.dot(x, w_ref[...], preferred_element_type=jnp.float32)
        acc = acc + b_ref[...]                                # broadcast (1, C) over TB
        # Numerically-stable softplus matching torch.nn.functional.softplus
        # (beta=1, threshold=20): x if x > 20 else log1p(exp(x)).
        sp = jnp.where(acc > 20.0, acc, jnp.log1p(jnp.exp(jnp.minimum(acc, 20.0))))
        # Columns [0, z_dim) -> identity (z_loc); columns [z_dim, C) -> softplus
        # (z_scale plus any lane-padding columns, which the wrapper discards).
        col = jax.lax.broadcasted_iota(jnp.int32, acc.shape, dimension=1)
        out_ref[...] = jnp.where(col >= z_dim, sp, acc).astype(out_ref.dtype)

    return kernel


def prepare_params(w_mn, b_mn, w_sd, b_sd, compute_dtype=jnp.bfloat16):
    """Pack PyTorch-layout Linear params (W: (Z, D), b: (Z,)) into one fused lane-dense
    matmul operand (D, C) and a (1, C) f32 bias, where C = 2*z_dim, zero-padded up to a
    multiple of 128 only when the extra output bytes stay below the per-row x traffic.
    Call ONCE (hoisted out of the per-call hot path).  Pass compute_dtype=jnp.float32
    for exact f32 Linear semantics on non-one-hot inputs."""
    w_mn = jnp.asarray(w_mn, jnp.float32)
    w_sd = jnp.asarray(w_sd, jnp.float32)
    z_dim, d = w_mn.shape
    two_z = 2 * z_dim

    w = jnp.concatenate([w_mn.T, w_sd.T], axis=1)                       # (D, 2Z) f32
    bias = jnp.concatenate([jnp.asarray(b_mn, jnp.float32),
                            jnp.asarray(b_sd, jnp.float32)], axis=0)    # (2Z,)

    c = two_z
    c_pad = _round_up(two_z, 128)
    # Lane-dense output store lever: the MXU pads N internally, so extra zero columns are
    # free compute; only pay the extra output HBM bytes when D (x bytes/row) dominates.
    if c_pad != two_z and c_pad <= d:
        w = jnp.pad(w, ((0, 0), (0, c_pad - two_z)))
        bias = jnp.pad(bias, (0, c_pad - two_z))
        c = c_pad

    return w.astype(compute_dtype), bias.reshape(1, c), z_dim


def encoder_forward(data, w_packed, b_packed, z_dim):
    """data: any shape whose trailing dims flatten to input_size per row.
    Returns (z_loc, z_scale), each (B, z_dim) float32.

    The matmul runs at w_packed.dtype (bf16 by default; exact for 0/1 one-hot MuE data).
    x is consumed at its native dtype; the narrowing cast happens inside the kernel."""
    d, c = w_packed.shape
    x = jnp.asarray(data).reshape(-1, d)           # reshape only -- no wrapper-side cast/pad
    b = x.shape[0]
    x_itemsize = jnp.dtype(x.dtype).itemsize
    w_itemsize = jnp.dtype(w_packed.dtype).itemsize

    # --- batch-tile selection from the per-generation VMEM capacity ----------------------
    vmem_cap = _vmem_capacity_bytes()
    budget = vmem_cap // 2                          # ~64 MiB on v5e/v6e, ~32 MiB on v7x
    # Grid-invariant operands (auto-pipeline keeps them resident; assume 2x buffering).
    fixed = 2 * d * c * w_itemsize + (1 << 16)
    # Per-batch-row VMEM: double-buffered x tile + in-kernel cast temp + double-buffered
    # f32 output tile.
    per_row = 2 * d * x_itemsize + d * w_itemsize + 2 * c * 4
    avail = max(budget - fixed, 0)
    tb = avail // max(per_row, 1)
    tb = min(tb, (8 * 1024 * 1024) // max(d * x_itemsize, 1))   # keep x tile <= ~8 MiB
    tb = min(tb, _round_up(b, 8))                   # don't over-allocate for tiny batches
    tb = max(8, (tb // 8) * 8)

    grid = (pl.cdiv(b, tb),)                        # ragged last tile handled by Pallas
    working = fixed + tb * per_row
    vmem_limit = int(min(int(vmem_cap * 0.9),
                         max(32 * 1024 * 1024, working + (2 << 20))))

    cost = pl.CostEstimate(
        flops=2 * b * d * c,
        transcendentals=2 * b * (c - z_dim),
        bytes_accessed=(b * d * x_itemsize + d * c * w_itemsize + b * c * 4 + c * 4),
    )

    out = pl.pallas_call(
        _make_encoder_kernel(z_dim),
        out_shape=jax.ShapeDtypeStruct((b, c), jnp.float32),
        grid=grid,
        in_specs=[
            pl.BlockSpec((tb, d), lambda i: (i, 0)),    # x tile: pipelined over batch
            pl.BlockSpec((d, c), lambda i: (0, 0)),     # fused weights: VMEM-resident
            pl.BlockSpec((1, c), lambda i: (0, 0)),     # fused bias:    VMEM-resident
        ],
        out_specs=pl.BlockSpec((tb, c), lambda i: (i, 0)),
        compiler_params=pltpu.CompilerParams(
            dimension_semantics=("parallel",),
            vmem_limit_bytes=vmem_limit,
        ),
        cost_estimate=cost,
    )(x, w_packed, b_packed)

    z_loc = out[:, :z_dim]
    z_scale = out[:, z_dim:2 * z_dim]
    return z_loc, z_scale


if __name__ == "__main__":
    # Small shapes consistent with the module.
    data_length = 8
    alphabet_length = 4
    z_dim = 16
    batch = 2
    input_size = data_length * alphabet_length

    key = jax.random.PRNGKey(0)
    k_idx, k_wmn, k_bmn, k_wsd, k_bsd = jax.random.split(key, 5)

    # One-hot sequence data (what the MuE encoder actually consumes); exact in bf16.
    idx = jax.random.randint(k_idx, (batch, data_length), 0, alphabet_length)
    data = jax.nn.one_hot(idx, alphabet_length, dtype=jnp.float32)     # (B, L, A)

    # PyTorch Linear-style params: W (z_dim, input_size), b (z_dim,)
    bound = 1.0 / (input_size ** 0.5)
    w_mn = jax.random.uniform(k_wmn, (z_dim, input_size), jnp.float32, -bound, bound)
    b_mn = jax.random.uniform(k_bmn, (z_dim,), jnp.float32, -bound, bound)
    w_sd = jax.random.uniform(k_wsd, (z_dim, input_size), jnp.float32, -bound, bound)
    b_sd = jax.random.uniform(k_bsd, (z_dim,), jnp.float32, -bound, bound)

    w_packed, b_packed, zd = prepare_params(w_mn, b_mn, w_sd, b_sd)    # hoisted; runs once
    z_loc, z_scale = encoder_forward(data, w_packed, b_packed, zd)
    jax.block_until_ready((z_loc, z_scale))

    # Pure-JAX reference at matching precision (bf16 matmul, f32 accumulate/epilogue).
    x_ref = data.reshape(-1, input_size).astype(jnp.bfloat16)
    wt_ref = jnp.concatenate([w_mn.T, w_sd.T], axis=1).astype(jnp.bfloat16)
    b_ref = jnp.concatenate([b_mn, b_sd], axis=0)
    pre = jnp.dot(x_ref, wt_ref, preferred_element_type=jnp.float32) + b_ref
    ref_loc = pre[:, :z_dim]
    ref_p = pre[:, z_dim:]
    ref_scale = jnp.where(ref_p > 20.0, ref_p,
                          jnp.log1p(jnp.exp(jnp.minimum(ref_p, 20.0))))

    assert z_loc.shape == (batch, z_dim) and z_scale.shape == (batch, z_dim)
    assert jnp.allclose(z_loc, ref_loc, atol=1e-3, rtol=1e-3), "z_loc mismatch"
    assert jnp.allclose(z_scale, ref_scale, atol=1e-3, rtol=1e-3), "z_scale mismatch"

    print("KERNEL_OK")
</pallas_src>

<mosaic_0001>
module attributes {stable_mosaic.version = 11 : i64} {
  func.func @kernel(%arg0: i32, %arg1: memref<8x32xf32, #tpu.memory_space<vmem>>, %arg2: memref<32x32xbf16, #tpu.memory_space<vmem>>, %arg3: memref<1x32xf32, #tpu.memory_space<vmem>>, %arg4: memref<8x32xf32, #tpu.memory_space<vmem>>) attributes {dimension_semantics = [#tpu.dimension_semantics<parallel>], iteration_bounds = array<i64: 1>, scalar_prefetch = 0 : i64, scratch_operands = 0 : i64, tpu.core_type = #tpu.core_type<tc>, window_params = [{transform_indices = @transform_0, window_bounds = array<i64: 8, 32>}, {pipeline_mode = #tpu.pipeline_mode<synchronous>, transform_indices = @transform_1, window_bounds = array<i64: 32, 32>}, {pipeline_mode = #tpu.pipeline_mode<synchronous>, transform_indices = @transform_2, window_bounds = array<i64: 1, 32>}, {transform_indices = @transform_3, window_bounds = array<i64: 8, 32>}]} {
    %c0 = arith.constant 0 : index
    %c0_0 = arith.constant 0 : index
    %0 = vector.load %arg1[%c0, %c0_0] : memref<8x32xf32, #tpu.memory_space<vmem>>, vector<8x32xf32>
    %1 = arith.truncf %0 : vector<8x32xf32> to vector<8x32xbf16>
    %c0_1 = arith.constant 0 : index
    %c0_2 = arith.constant 0 : index
    %2 = vector.load %arg2[%c0_1, %c0_2] : memref<32x32xbf16, #tpu.memory_space<vmem>>, vector<32x32xbf16>
    %cst = arith.constant dense<0.000000e+00> : vector<8x32xf32>
    %3 = tpu.matmul %1, %2, %cst {dimension_numbers = #tpu.dot_dimension_numbers<[1], [0], [0], [1], [0, 0, 1, 1], [], []>} : vector<8x32xbf16>, vector<32x32xbf16>, vector<8x32xf32> -> vector<8x32xf32>
    %c0_3 = arith.constant 0 : index
    %c0_4 = arith.constant 0 : index
    %4 = vector.load %arg3[%c0_3, %c0_4] : memref<1x32xf32, #tpu.memory_space<vmem>>, vector<1x32xf32>
    %5 = vector.broadcast %4 : vector<1x32xf32> to vector<8x32xf32>
    %6 = arith.addf %3, %5 : vector<8x32xf32>
    %cst_5 = arith.constant 2.000000e+01 : f32
    %7 = vector.broadcast %cst_5 : f32 to vector<8x32xf32>
    %8 = arith.cmpf ogt, %6, %7 : vector<8x32xf32>
    %cst_6 = arith.constant 2.000000e+01 : f32
    %9 = vector.broadcast %cst_6 : f32 to vector<8x32xf32>
    %10 = arith.minimumf %6, %9 : vector<8x32xf32>
    %11 = math.exp %10 : vector<8x32xf32>
    %12 = math.log1p %11 : vector<8x32xf32>
    %13 = arith.select %8, %6, %12 : vector<8x32xi1>, vector<8x32xf32>
    %14 = tpu.iota {dimensions = array<i32: 1>} : vector<8x32xi32>
    %c16_i32 = arith.constant 16 : i32
    %15 = vector.broadcast %c16_i32 : i32 to vector<8x32xi32>
    %16 = arith.cmpi sge, %14, %15 : vector<8x32xi32>
    %17 = arith.select %16, %13, %6 : vector<8x32xi1>, vector<8x32xf32>
    %c0_7 = arith.constant 0 : index
    %c0_8 = arith.constant 0 : index
    %18 = vector.load %arg4[%c0_7, %c0_8] : memref<8x32xf32, #tpu.memory_space<vmem>>, vector<8x32xf32>
    tpu.vector_store %arg4[%c0_7, %c0_8], %17 {strides = array<i32>} : memref<8x32xf32, #tpu.memory_space<vmem>>, vector<8x32xf32>,
    return
  }
  func.func @transform_0(%arg0: i32) -> (i32, i32) {
    %c0_i32 = arith.constant 0 : i32
    %c0_i32_0 = arith.constant 0 : i32
    return %arg0, %c0_i32 : i32, i32
  }
  func.func @transform_1(%arg0: i32) -> (i32, i32) {
    %c0_i32 = arith.constant 0 : i32
    %c0_i32_0 = arith.constant 0 : i32
    %c0_i32_1 = arith.constant 0 : i32
    return %c0_i32, %c0_i32_0 : i32, i32
  }
  func.func @transform_2(%arg0: i32) -> (i32, i32) {
    %c0_i32 = arith.constant 0 : i32
    %c0_i32_0 = arith.constant 0 : i32
    %c0_i32_1 = arith.constant 0 : i32
    return %c0_i32, %c0_i32_0 : i32, i32
  }
  func.func @transform_3(%arg0: i32) -> (i32, i32) {
    %c0_i32 = arith.constant 0 : i32
    %c0_i32_0 = arith.constant 0 : i32
    return %arg0, %c0_i32 : i32, i32
  }
}

</mosaic_0001>

<llo_original>
// kernel: tpu_custom_call.1
$region0: #{tpu_custom_call.1}
  #allocation0 [shape = 'u32[]', space=smem, size = 0x4, offset = 0x4, fixed_abs, tag = 'smem constant byte address 0x4 - core index']
  #allocation1 [shape = 'u32[144,128]{1,0:T(1,128)}', space=vmem, size = 0x12000, scoped, tag = 'internal scratch']
  %s0 = inlined_call_operand.hbm [shape: f32[2,32], index: 0, kind: input, shape index: {}]
  %s1 = inlined_call_operand.hbm [shape: bf16[32,32], index: 1, kind: input, shape index: {}]
  %s2 = inlined_call_operand.vmem [shape: f32[1,32], index: 2, kind: input, shape index: {}]
  %s3 = inlined_call_operand.hbm [shape: f32[2,32], index: 3, kind: output, shape index: {}]
  %s4 = sld [smem:[#allocation0]]
  $region30: #{tpu_custom_call.1} parent=0
    _
  %s6 = ssub.s32 1, %s4
  %s7 = scalar_select 0, %s6, %s4
  $region1: #{tpu_custom_call.1} parent=0
    #allocation2 [shape = 'u8[4096]{0}', space=vmem, size = 0x1000, scoped, tag = 'input window, operand 0, single buffered']
    #allocation3 [shape = 's32[1]{0}', space=sflag, size = 0x4, scoped, tag = 'scoped memory for tpu_custom_call.1']
    #allocation4 [shape = 's32[1]{0}', space=sflag, size = 0x4, scoped, tag = 'scoped memory for tpu_custom_call.1']
    #allocation5 [shape = 'u8[8192]{0}', space=vmem, size = 0x2000, scoped, tag = 'input window, operand 1, single buffered']
    #allocation6 [shape = 's32[1]{0}', space=sflag, size = 0x4, scoped, tag = 'scoped memory for tpu_custom_call.1']
    #allocation7 [shape = 'u8[4096]{0}', space=vmem, size = 0x1000, scoped, tag = 'output window, operand 0, single buffered']
    %8 = vsyncpa [#allocation3], 0
    %9 = vsyncpa [#allocation6], 0
    %10 = vsyncpa [#allocation4], 0
    // Predicated region
    $region2: #{tpu_custom_call.1} parent=1 // pred_check
      _
    $region3: #{tpu_custom_call.1} parent=1 // pred_check_branch
      %12 = sbr.rel (0) target = $region5
    $region4: #{tpu_custom_call.1} parent=1 // pred_region
      %s14 = ssub.s32 128, 32
      %15 = vsyncadd [#allocation3], %s14
      %s16 = sshll.u32 [#allocation2], 4
      %s17 = int_to_ptr.vmem [resolvable:$true] %s16
      %22 = dma.hbm_to_vmem [thread:$0]  %s0, 32, %s17, [#allocation3], 32, 32, 2
    $region5: #{tpu_custom_call.1} parent=1 // pred_fallthru
      _
    // Predicated region
    $region6: #{tpu_custom_call.1} parent=1 // pred_check
      _
    $region7: #{tpu_custom_call.1} parent=1 // pred_check_branch
      %24 = sbr.rel (0) target = $region9
    $region8: #{tpu_custom_call.1} parent=1 // pred_region
      %s26 = ssub.s32 256, 256
      %27 = vsyncadd [#allocation6], %s26
      %s28 = sshll.u32 [#allocation5], 4
      %s29 = int_to_ptr.vmem [resolvable:$true] %s28
      %34 = dma.hbm_to_vmem [thread:$0]  %s1, 256, %s29, [#allocation6], 64, 64, 4
    $region9: #{tpu_custom_call.1} parent=1 // pred_fallthru
      _
    // Predicated region
    $region10: #{tpu_custom_call.1} parent=1 // pred_check
      _
    $region11: #{tpu_custom_call.1} parent=1 // pred_check_branch
      %36 = sbr.rel (0) target = $region13
    $region12: #{tpu_custom_call.1} parent=1 // pred_region
      _
    $region13: #{tpu_custom_call.1} parent=1 // pred_fallthru
      _
    // Predicated region
    $region14: #{tpu_custom_call.1} parent=1 // pred_check
      _
    $region15: #{tpu_custom_call.1} parent=1 // pred_check_branch
      %38 = sbr.rel (0) target = $region17
    $region16: #{tpu_custom_call.1} parent=1 // pred_region
      %39 = dma.done [#allocation3], 128
    $region17: #{tpu_custom_call.1} parent=1 // pred_fallthru
      _
    // Predicated region
    $region18: #{tpu_custom_call.1} parent=1 // pred_check
      _
    $region19: #{tpu_custom_call.1} parent=1 // pred_check_branch
      %41 = sbr.rel (0) target = $region21
    $region20: #{tpu_custom_call.1} parent=1 // pred_region
      %42 = dma.done [#allocation6], 256
    $region21: #{tpu_custom_call.1} parent=1 // pred_fallthru
      _
    %v44 = vld [vmem:[#allocation2] sm:$0xff]
    %v45 = vpack.c.bf16 %v44, %v44
    %v46 = vld [vmem:[#allocation5] sm:$0xf]
    %v47 = vld [vmem:[#allocation5 + $0x4] sm:$0xf]
    %v48 = vld [vmem:[#allocation5 + $0x8] sm:$0xf]
    %v49 = vld [vmem:[#allocation5 + $0xc] sm:$0xf]
    %v50 = vld [vmem:[%s2] sm:$0x1]
    %v52 = vlaneseq
    %v53 = vshrl.u32 %v52, 7
    %v54 = vsub.s32 0, %v53
    %v55 = vrot.slane %v50, %v54
    %v61 = vunpack.c.l.b16 %v46
    %v62 = vunpack.c.l.b16 %v47
    %v63 = vunpack.c.l.b16 %v48
    %v64 = vunpack.c.l.b16 %v49
    %v65 = vpack.c.b16 %v62, %v61
    %v66 = vpack.c.b16 %v64, %v63
    %vm69 = vcmask 261120
    %v71 = vsel %vm69, %v45, 0
    %73 = vmatprep.subr.bf16.mxu0 0
    %74 = vmatpush1.bf16.msra.mxu0 %v65
    %75 = vmatprep.subr.bf16.mxu0 0
    %76 = vmatpush1.bf16.msra.mxu0 %v66
    %77 = vmatprep.subr.bf16.mxu0 0
    %78 = vmatpush1.bf16.msra.mxu0 0
    %79 = vmatprep.subr.bf16.mxu0 0
    %80 = vmatpush1.bf16.msra.mxu0 0
    %81 = vmatprep.subr.bf16.mxu0 0
    %82 = vmatpush1.bf16.msra.mxu0 0
    %83 = vmatprep.subr.bf16.mxu0 0
    %84 = vmatpush1.bf16.msra.mxu0 0
    %85 = vmatprep.subr.bf16.mxu0 0
    %86 = vmatpush1.bf16.msra.mxu0 0
    %87 = vmatprep.subr.bf16.mxu0 0
    %88 = vmatpush1.bf16.msra.mxu0 0
    %89 = vmatprep.subr.bf16.mxu0 0
    %90 = vmatpush1.bf16.msra.mxu0 0
    %91 = vmatprep.subr.bf16.mxu0 0
    %92 = vmatpush1.bf16.msra.mxu0 0
    %93 = vmatprep.subr.bf16.mxu0 0
    %94 = vmatpush1.bf16.msra.mxu0 0
    %95 = vmatprep.subr.bf16.mxu0 0
    %96 = vmatpush1.bf16.msra.mxu0 0
    %97 = vmatprep.subr.bf16.mxu0 0
    %98 = vmatpush1.bf16.msra.mxu0 0
    %99 = vmatprep.subr.bf16.mxu0 0
    %100 = vmatpush1.bf16.msra.mxu0 0
    %101 = vmatprep.subr.bf16.mxu0 0
    %102 = vmatpush1.bf16.msra.mxu0 0
    %103 = vmatprep.subr.bf16.mxu0 0
    %104 = vmatpush1.bf16.msra.mxu0 0
    %105 = vmatprep.mubr.bf16.mxu0 0
    %106 = vmatmul.mubr.bf16.gmra.mrb[0].mxu0 %v71
    %v107 = vpop.f32.mrb[0].mxu0
    %v108 = vadd.f32 %v55, %v107
    %v109 = vpop.f32.mrb[0].mxu0
    %v110 = vpop.f32.mrb[0].mxu0
    %v111 = vpop.f32.mrb[0].mxu0
    %112 = vdwg.mxu0
    %vm113 = vcmp.gt.f32.partialorder %v108, 20.0
    %v114 = vmin.f32 %v108, 20.0
    %v115 = vmul.f32 %v114, 1.442695
    %v116 = vpow.pop %v115
    %v117 = vadd.f32 %v116, 1.0
    %v118 = vlog2.pop %v117
    %v119 = vmul.f32 %v118, 0.6931472
    %v120 = vmul.f32 -0.5, %v116
    %v121 = vadd.f32 %v120, 1.0
    %v122 = vmul.f32 %v121, %v116
    %v123 = vand.u32 2147483647, %v116
    %vm124 = vcmp.lt.f32.partialorder %v123, 0.0004427343
    %v125 = vsel %vm124, %v122, %v119
    %v126 = vsel %vm113, %v108, %v125
    %v127 = vlaneseq
    %v128 = vand.u32 %v127, 127
    %vm129 = vcmp.ge.s32.totalorder %v128, 16
    %v130 = vsel %vm129, %v126, %v108
    %131 = vst.msk [vmem:[#allocation7] sm:$0xff] %vm69, %v130
    // Predicated region
    $region22: #{tpu_custom_call.1} parent=1 // pred_check
      _
    $region23: #{tpu_custom_call.1} parent=1 // pred_check_branch
      %133 = sbr.rel (0) target = $region25
    $region24: #{tpu_custom_call.1} parent=1 // pred_region
      %s135 = ssub.s32 128, 32
      %136 = vsyncadd [#allocation4], %s135
      %s137 = sshll.u32 [#allocation7], 4
      %s138 = int_to_ptr.vmem [resolvable:$true] %s137
      %143 = dma.vmem_to_hbm [thread:$0]  %s138, 32, %s3, [#allocation4], 32, 32, 2
    $region25: #{tpu_custom_call.1} parent=1 // pred_fallthru
      _
    // Predicated region
    $region26: #{tpu_custom_call.1} parent=1 // pred_check
      _
    $region27: #{tpu_custom_call.1} parent=1 // pred_check_branch
      %145 = sbr.rel (0) target = $region29
    $region28: #{tpu_custom_call.1} parent=1 // pred_region
      %146 = dma.done [#allocation4], 128
    $region29: #{tpu_custom_call.1} parent=1 // pred_fallthru
      _
    %147 = vsyncpa [#allocation3], 1
    %148 = vsyncpa [#allocation6], 1
    %149 = vsyncpa [#allocation4], 1

</llo_original>
